<compile_context>
chip_gen: v5e
topology: v5e:2x2
jax: 0.10.0
libtpu: 0.0.40
codegen_flags: <defaults>
</compile_context>

<pallas_src>
import jax
import jax.numpy as jnp
from jax.experimental import pallas as pl
from jax.experimental.pallas import tpu as pltpu


def linear_kernel(x_ref, wt_ref, b_ref, o_ref):
    # x_ref: (TM, K), wt_ref: (K, O)  -> plain MXU contraction, f32 accumulate.
    acc = jnp.dot(x_ref[...], wt_ref[...], preferred_element_type=jnp.float32)
    o_ref[...] = (acc + b_ref[...]).astype(o_ref.dtype)


def _round_up(x, m):
    return ((x + m - 1) // m) * m


def _pick_batch_tile(batch, input_dim, output_dim, *,
                     vmem_budget_bytes=16 * 2 ** 20,  # conservative: fits v5e scoped default
                     max_tile=1024,
                     target_steps=8):
    """Pick a batch tile (multiple of 8) from a VMEM budget.

    VMEM per tile ~= 2*(tm*K + tm*O)*4  (double-buffered x / out)
                   + (K*O + O)*4        (single-buffered weight / bias).
    Also shrink the tile so large batches keep >= target_steps grid steps,
    which restores the DMA pipeline per core once v7x megacore splits the grid.
    """
    per_row = 2 * 4 * (input_dim + output_dim)              # x + out, double-buffered
    w_bytes = 4 * (input_dim * output_dim + output_dim)      # weight + bias, single-buffered
    row_budget = max(vmem_budget_bytes - w_bytes, 8 * per_row)
    cap = max(8, min(max_tile, (row_budget // per_row) // 8 * 8))
    want = max(8, _round_up(pl.cdiv(batch, target_steps), 8))
    return min(cap, want, _round_up(batch, 8))


def logistic_regression_forward(x, weight, bias, *, max_tile=1024):
    """Equivalent of nn.Linear(input_dim, output_dim)(x).

    x:      (B, input_dim)            float32
    weight: (output_dim, input_dim)   (PyTorch convention)
    bias:   (output_dim,)
    returns (B, output_dim)           float32
    """
    B, input_dim = x.shape
    output_dim = weight.shape[0]

    tm = _pick_batch_tile(B, input_dim, output_dim, max_tile=max_tile)

    # Pad the batch so every grid step sees a full tile (padded rows are
    # sliced off below; their contents never affect real rows).
    Bp = _round_up(B, tm)
    x_in = x if Bp == B else jnp.pad(x, ((0, Bp - B), (0, 0)))
    grid = (Bp // tm,)

    wt = weight.T                      # (K, O): one-time, KiB-scale re-layout
    b2d = bias.reshape(1, output_dim)  # (1, O): broadcasts over rows in-kernel

    cost = pl.CostEstimate(
        flops=2 * Bp * input_dim * output_dim,
        transcendentals=0,
        bytes_accessed=4 * (Bp * input_dim + input_dim * output_dim
                            + output_dim + Bp * output_dim),
    )

    out = pl.pallas_call(
        linear_kernel,
        out_shape=jax.ShapeDtypeStruct((Bp, output_dim), jnp.float32),
        grid_spec=pltpu.PrefetchScalarGridSpec(
            num_scalar_prefetch=0,
            grid=grid,
            in_specs=[
                # batch-tiled activations: new tile per grid step -> pipelined DMA
                pl.BlockSpec((tm, input_dim), lambda i: (i, 0)),
                # weight / bias are grid-constant: fetched once, single-buffered
                pl.BlockSpec((input_dim, output_dim), lambda i: (0, 0),
                             pipeline_mode=pl.Buffered(1)),
                pl.BlockSpec((1, output_dim), lambda i: (0, 0),
                             pipeline_mode=pl.Buffered(1)),
            ],
            out_specs=pl.BlockSpec((tm, output_dim), lambda i: (i, 0)),
        ),
        compiler_params=pltpu.CompilerParams(
            # batch tiles are independent -> megacore-shardable on v7x
            dimension_semantics=("parallel",),
            # 32 MiB scoped VMEM: above v5e's 16 MiB default, within v7x's
            # 64 MiB physical; the tile picker budgets well under this.
            vmem_limit_bytes=32 * 2 ** 20,
        ),
        cost_estimate=cost,
    )(x_in, wt, b2d)

    return out if Bp == B else out[:B]


def _reference(x, weight, bias):
    return x @ weight.T + bias


if __name__ == "__main__":
    key = jax.random.PRNGKey(0)

    # --- Case 1: small shapes implied by the module (single-tile path) -------
    batch, input_dim, output_dim = 8, 32, 4
    kx, kw, kb = jax.random.split(key, 3)
    bound = 1.0 / (input_dim ** 0.5)
    x = jax.random.normal(kx, (batch, input_dim), dtype=jnp.float32)
    weight = jax.random.uniform(
        kw, (output_dim, input_dim), minval=-bound, maxval=bound, dtype=jnp.float32
    )
    bias = jax.random.uniform(
        kb, (output_dim,), minval=-bound, maxval=bound, dtype=jnp.float32
    )

    out = logistic_regression_forward(x, weight, bias)
    jax.block_until_ready(out)
    ref = _reference(x, weight, bias)
    assert out.shape == (batch, output_dim)
    assert jnp.allclose(out, ref, atol=1e-5, rtol=1e-5)

    # --- Case 2: larger, ragged batch -> padded multi-step pipelined grid ----
    batch2, input_dim2, output_dim2 = 520, 128, 8
    k2x, k2w, k2b = jax.random.split(jax.random.PRNGKey(1), 3)
    bound2 = 1.0 / (input_dim2 ** 0.5)
    x2 = jax.random.normal(k2x, (batch2, input_dim2), dtype=jnp.float32)
    weight2 = jax.random.uniform(
        k2w, (output_dim2, input_dim2), minval=-bound2, maxval=bound2,
        dtype=jnp.float32,
    )
    bias2 = jax.random.uniform(
        k2b, (output_dim2,), minval=-bound2, maxval=bound2, dtype=jnp.float32
    )

    out2 = logistic_regression_forward(x2, weight2, bias2)
    jax.block_until_ready(out2)
    ref2 = _reference(x2, weight2, bias2)
    assert out2.shape == (batch2, output_dim2)
    assert jnp.allclose(out2, ref2, atol=1e-4, rtol=1e-4)

    print("KERNEL_OK")
</pallas_src>

<mosaic_0001>
module attributes {stable_mosaic.version = 11 : i64} {
  func.func @linear_kernel(%arg0: i32, %arg1: memref<8x32xf32, #tpu.memory_space<vmem>>, %arg2: memref<32x4xf32, #tpu.memory_space<vmem>>, %arg3: memref<1x4xf32, #tpu.memory_space<vmem>>, %arg4: memref<8x4xf32, #tpu.memory_space<vmem>>) attributes {dimension_semantics = [#tpu.dimension_semantics<parallel>], iteration_bounds = array<i64: 1>, scalar_prefetch = 0 : i64, scratch_operands = 0 : i64, tpu.core_type = #tpu.core_type<tc>, window_params = [{transform_indices = @transform_0, window_bounds = array<i64: 8, 32>}, {pipeline_mode = #tpu.pipeline_mode<synchronous>, transform_indices = @transform_1, window_bounds = array<i64: 32, 4>}, {pipeline_mode = #tpu.pipeline_mode<synchronous>, transform_indices = @transform_2, window_bounds = array<i64: 1, 4>}, {transform_indices = @transform_3, window_bounds = array<i64: 8, 4>}]} {
    %c0 = arith.constant 0 : index
    %c0_0 = arith.constant 0 : index
    %0 = vector.load %arg1[%c0, %c0_0] : memref<8x32xf32, #tpu.memory_space<vmem>>, vector<8x32xf32>
    %c0_1 = arith.constant 0 : index
    %c0_2 = arith.constant 0 : index
    %1 = vector.load %arg2[%c0_1, %c0_2] : memref<32x4xf32, #tpu.memory_space<vmem>>, vector<32x4xf32>
    %cst = arith.constant dense<0.000000e+00> : vector<8x4xf32>
    %2 = tpu.matmul %0, %1, %cst {dimension_numbers = #tpu.dot_dimension_numbers<[1], [0], [0], [1], [0, 0, 1, 1], [], []>} : vector<8x32xf32>, vector<32x4xf32>, vector<8x4xf32> -> vector<8x4xf32>
    %c0_3 = arith.constant 0 : index
    %c0_4 = arith.constant 0 : index
    %3 = vector.load %arg3[%c0_3, %c0_4] : memref<1x4xf32, #tpu.memory_space<vmem>>, vector<1x4xf32>
    %4 = vector.broadcast %3 : vector<1x4xf32> to vector<8x4xf32>
    %5 = arith.addf %2, %4 : vector<8x4xf32>
    %c0_5 = arith.constant 0 : index
    %c0_6 = arith.constant 0 : index
    %6 = vector.load %arg4[%c0_5, %c0_6] : memref<8x4xf32, #tpu.memory_space<vmem>>, vector<8x4xf32>
    tpu.vector_store %arg4[%c0_5, %c0_6], %5 {strides = array<i32>} : memref<8x4xf32, #tpu.memory_space<vmem>>, vector<8x4xf32>,
    return
  }
  func.func @transform_0(%arg0: i32) -> (i32, i32) {
    %c0_i32 = arith.constant 0 : i32
    %c0_i32_0 = arith.constant 0 : i32
    return %arg0, %c0_i32 : i32, i32
  }
  func.func @transform_1(%arg0: i32) -> (i32, i32) {
    %c0_i32 = arith.constant 0 : i32
    %c0_i32_0 = arith.constant 0 : i32
    %c0_i32_1 = arith.constant 0 : i32
    return %c0_i32, %c0_i32_0 : i32, i32
  }
  func.func @transform_2(%arg0: i32) -> (i32, i32) {
    %c0_i32 = arith.constant 0 : i32
    %c0_i32_0 = arith.constant 0 : i32
    %c0_i32_1 = arith.constant 0 : i32
    return %c0_i32, %c0_i32_0 : i32, i32
  }
  func.func @transform_3(%arg0: i32) -> (i32, i32) {
    %c0_i32 = arith.constant 0 : i32
    %c0_i32_0 = arith.constant 0 : i32
    return %arg0, %c0_i32 : i32, i32
  }
}

</mosaic_0001>

<llo_original>
// kernel: tpu_custom_call.1
$region0: #{tpu_custom_call.1}
  #allocation0 [shape = 'u32[]', space=smem, size = 0x4, offset = 0x4, fixed_abs, tag = 'smem constant byte address 0x4 - core index']
  #allocation1 [shape = 'u32[72,128]{1,0:T(1,128)}', space=vmem, size = 0x9000, scoped, tag = 'internal scratch']
  %s0 = inlined_call_operand.vmem [shape: f32[8,32], index: 0, kind: input, shape index: {}]
  %s1 = inlined_call_operand.vmem [shape: f32[32,4], index: 1, kind: input, shape index: {}]
  %s2 = inlined_call_operand.vmem [shape: f32[1,4], index: 2, kind: input, shape index: {}]
  %s3 = inlined_call_operand.vmem [shape: f32[8,4], index: 3, kind: output, shape index: {}]
  %s4 = sld [smem:[#allocation0]]
  $region22: #{tpu_custom_call.1} parent=0
    _
  %s6 = ssub.s32 1, %s4
  %s7 = scalar_select 0, %s6, %s4
  // Predicated region
  $region2: #{tpu_custom_call.1} parent=0 // pred_check
    _
  $region3: #{tpu_custom_call.1} parent=0 // pred_check_branch
    %9 = sbr.rel (0) target = $region5
  $region4: #{tpu_custom_call.1} parent=0 // pred_region
    _
  $region5: #{tpu_custom_call.1} parent=0 // pred_fallthru
    _
  // Predicated region
  $region6: #{tpu_custom_call.1} parent=0 // pred_check
    _
  $region7: #{tpu_custom_call.1} parent=0 // pred_check_branch
    %11 = sbr.rel (0) target = $region9
  $region8: #{tpu_custom_call.1} parent=0 // pred_region
    _
  $region9: #{tpu_custom_call.1} parent=0 // pred_fallthru
    _
  // Predicated region
  $region10: #{tpu_custom_call.1} parent=0 // pred_check
    _
  $region11: #{tpu_custom_call.1} parent=0 // pred_check_branch
    %13 = sbr.rel (0) target = $region13
  $region12: #{tpu_custom_call.1} parent=0 // pred_region
    _
  $region13: #{tpu_custom_call.1} parent=0 // pred_fallthru
    _
  %v14 = vld [vmem:[%s0] sm:$0xff]
  %v15 = vld [vmem:[%s1] sm:$0xff]
  %v16 = vld [vmem:[%s1 + $0x8] sm:$0xff]
  %v17 = vld [vmem:[%s1 + $0x10] sm:$0xff]
  %v18 = vld [vmem:[%s1 + $0x18] sm:$0xff]
  %v19 = vld [vmem:[%s2] sm:$0x1]
  %v21 = vperm.slane %v19, 0
  %vm23 = vcmask 261120
  %v25 = vsel %vm23, %v14, 0
  %27 = vmatpush.msra.mxu0 0.0
  %28 = vmatpush.msra.mxu0 0.0
  %29 = vmatpush.msra.mxu0 0.0
  %30 = vmatpush.msra.mxu0 0.0
  %31 = vmatpush.msra.mxu0 0.0
  %32 = vmatpush.msra.mxu0 0.0
  %33 = vmatpush.msra.mxu0 0.0
  %34 = vmatpush.msra.mxu0 0.0
  %35 = vmatpush.msra.mxu0 0.0
  %36 = vmatpush.msra.mxu0 0.0
  %37 = vmatpush.msra.mxu0 0.0
  %38 = vmatpush.msra.mxu0 0.0
  %39 = vmatpush.msra.mxu0 %v18
  %40 = vmatpush.msra.mxu0 %v17
  %41 = vmatpush.msra.mxu0 %v16
  %42 = vmatpush.msra.mxu0 %v15
  %43 = vmatmul.f32.gmra.mxu0 %v25
  %v44 = vpop.f32.mrf.mxu0
  %v45 = vadd.f32 %v21, %v44
  %46 = vdwg.mxu0
  %vm47 = vcmask 31744
  %48 = vst.msk [vmem:[%s3] sm:$0xff] %vm47, %v45
  // Predicated region
  $region14: #{tpu_custom_call.1} parent=0 // pred_check
    _
  $region15: #{tpu_custom_call.1} parent=0 // pred_check_branch
    %50 = sbr.rel (0) target = $region17
  $region16: #{tpu_custom_call.1} parent=0 // pred_region
    _
  $region17: #{tpu_custom_call.1} parent=0 // pred_fallthru
    _
  // Predicated region
  $region18: #{tpu_custom_call.1} parent=0 // pred_check
    _
  $region19: #{tpu_custom_call.1} parent=0 // pred_check_branch
    %52 = sbr.rel (0) target = $region21
  $region20: #{tpu_custom_call.1} parent=0 // pred_region
    _
  $region21: #{tpu_custom_call.1} parent=0 // pred_fallthru
    _

</llo_original>
